<compile_context>
chip_gen: v7x
topology: tpu7x:2x2x1
jax: 0.10.0
libtpu: 0.0.40
codegen_flags: <defaults>
</compile_context>

<pallas_src>
import jax
import jax.numpy as jnp
from jax.experimental import pallas as pl
from jax.experimental.pallas import tpu as pltpu


def _fcn_kernel(xT_ref,
                w1_ref, b1_ref,
                w2_ref, b2_ref,
                w3_ref, b3_ref,
                wo_ref, bo_ref,
                out_ref):
    # Activations kept transposed: (features, TB) -- batch on the lane axis.
    x = xT_ref[...]                                                      # (10, TB) bf16

    h = jnp.dot(w1_ref[...], x, preferred_element_type=jnp.float32) + b1_ref[...]
    h = jnp.maximum(h, 0.0).astype(jnp.bfloat16)
    h = jnp.dot(w2_ref[...], h, preferred_element_type=jnp.float32) + b2_ref[...]
    h = jnp.maximum(h, 0.0).astype(jnp.bfloat16)
    h = jnp.dot(w3_ref[...], h, preferred_element_type=jnp.float32) + b3_ref[...]
    h = jnp.maximum(h, 0.0).astype(jnp.bfloat16)
    logits = jnp.dot(wo_ref[...], h, preferred_element_type=jnp.float32) + bo_ref[...]  # (2, TB) f32

    # 2-class softmax via sigmoid: p0 = 1/(1+exp(l1-l0)), p1 = 1-p0.
    # Numerically robust (exp overflow -> inf -> reciprocal -> 0, correct limit).
    d = logits[0:1, :] - logits[1:2, :]                                  # (1, TB)
    p0 = pl.reciprocal(1.0 + jnp.exp(-d), approx=True)
    # Direct sublane stores (no concatenate, no extra vreg shuffle).
    out_ref[0:1, :] = p0.astype(out_ref.dtype)
    out_ref[1:2, :] = (1.0 - p0).astype(out_ref.dtype)


def _round_up(v, m):
    return ((v + m - 1) // m) * m


def nlayer_fcn_forward(x, params, *, tb_max=32768, out_dtype=jnp.float32,
                       transposed_input=False, return_transposed=False):
    """Fused NLayerFCN forward.

    x: (B, dim[0]) or (dim[0],) f32; or (dim[0], B) bf16 if transposed_input.
    params: PyTorch-layout weights (out, in) and biases (out, 1).
    Returns softmax probabilities: (B, dim[-1]) by default, or (dim[-1], B_pad)
    sliced to B if return_transposed (skips the output transpose pass).
    """
    # Tiny parameters: cast weights to bf16 once (feed the MXU native path),
    # keep biases f32 (added to the f32 accumulator).
    w1, b1 = params["w1"].astype(jnp.bfloat16), params["b1"].astype(jnp.float32)
    w2, b2 = params["w2"].astype(jnp.bfloat16), params["b2"].astype(jnp.float32)
    w3, b3 = params["w3"].astype(jnp.bfloat16), params["b3"].astype(jnp.float32)
    wo, bo = params["wo"].astype(jnp.bfloat16), params["bo"].astype(jnp.float32)
    out_dim = wo.shape[0]

    if transposed_input:
        in_dim, B = x.shape
    else:
        if x.ndim == 1:
            x = x.reshape(1, -1)          # mirrors the PyTorch view(1, -1) branch
        B, in_dim = x.shape

    # Tile selection: big tiles (amortize ~0.35us/step overhead), minimal batch
    # padding, and >=2 grid steps when the batch allows (v7x megacore sharding).
    b128 = _round_up(B, 128)
    nsteps = max(pl.cdiv(b128, tb_max), 2 if b128 > 128 else 1)
    tb = _round_up(pl.cdiv(b128, nsteps), 128)
    b_pad = tb * nsteps
    # NOTE: at tb<=32768 the double-buffered x/out tiles are ~4-5 MiB, well
    # inside the default scoped VMEM on v5e/v6e/v7x; no vmem_limit needed.

    if transposed_input:
        # Caller already provides (in_dim, B) bf16 -> only (cheap) lane padding.
        xT = x.astype(jnp.bfloat16)
        if b_pad != B:
            xT = jnp.pad(xT, ((0, 0), (0, b_pad - B)))
    else:
        # Single fused boundary pass: pad -> transpose -> bf16 cast in one
        # expression so XLA emits one fusion (one read of x, one bf16 write).
        xp = jnp.pad(x, ((0, b_pad - B), (0, 0))) if b_pad != B else x
        xT = xp.T.astype(jnp.bfloat16)                                   # (in_dim, b_pad)

    def resident(a):  # whole array, same block every grid step -> stays in VMEM
        return pl.BlockSpec(a.shape, lambda i: (0, 0))

    out_T = pl.pallas_call(
        _fcn_kernel,
        out_shape=jax.ShapeDtypeStruct((out_dim, b_pad), out_dtype),
        grid=(nsteps,),
        in_specs=[
            pl.BlockSpec((in_dim, tb), lambda i: (0, i)),                # x tile
            resident(w1), resident(b1),
            resident(w2), resident(b2),
            resident(w3), resident(b3),
            resident(wo), resident(bo),
        ],
        out_specs=pl.BlockSpec((out_dim, tb), lambda i: (0, i)),
        compiler_params=pltpu.CompilerParams(
            dimension_semantics=("parallel",)),                          # v7x: 2 TCs
    )(xT, w1, b1, w2, b2, w3, b3, wo, bo)

    if return_transposed:
        return out_T[:, :B]                                              # (out_dim, B)
    return out_T[:, :B].T                                                # (B, out_dim)


def init_params(key, dim):
    """PyTorch nn.Linear default init U(-1/sqrt(in), 1/sqrt(in)).
    Weights in PyTorch layout (out, in); biases as (out, 1) column vectors."""
    names = ["w1", "w2", "w3", "wo"]
    ins = [dim[0], dim[1], dim[2], dim[3]]
    outs = [dim[1], dim[2], dim[3], dim[4]]
    params = {}
    for name, fin, fout in zip(names, ins, outs):
        key, kw, kb = jax.random.split(key, 3)
        bound = 1.0 / jnp.sqrt(float(fin))
        params[name] = jax.random.uniform(kw, (fout, fin), jnp.float32, -bound, bound)
        params["b" + name[1:]] = jax.random.uniform(
            kb, (fout, 1), jnp.float32, -bound, bound)
    return params


def _reference(x, params):
    """Pure-JAX reference (standard (B, F) layout, PyTorch math), with x and
    weights rounded to bf16 to match the kernel's MXU input dtypes."""
    def r(a):
        return a.astype(jnp.bfloat16).astype(jnp.float32)
    h = r(x)
    for n in ("1", "2", "3"):
        h = jnp.maximum(h @ r(params["w" + n]).T + params["b" + n].reshape(1, -1), 0.0)
    logits = h @ r(params["wo"]).T + params["bo"].reshape(1, -1)
    return jax.nn.softmax(logits, axis=1)


if __name__ == "__main__":
    dim = [10, 10, 10, 20, 2]
    key = jax.random.PRNGKey(0)
    key, kx = jax.random.split(key)

    params = init_params(key, dim)
    x = jax.random.normal(kx, (8, dim[0]), jnp.float32)  # batch=8, features=10

    out = jax.block_until_ready(nlayer_fcn_forward(x, params))
    ref = _reference(x, params)

    assert out.shape == (8, dim[-1])
    assert bool(jnp.allclose(jnp.sum(out, axis=1), 1.0, atol=1e-4))
    assert bool(jnp.allclose(out, ref, atol=2e-2))

    print("KERNEL_OK")
</pallas_src>

<mosaic_0001>
module attributes {stable_mosaic.version = 11 : i64} {
  func.func @_fcn_kernel(%arg0: i32, %arg1: memref<10x128xbf16, #tpu.memory_space<vmem>>, %arg2: memref<10x10xbf16, #tpu.memory_space<vmem>>, %arg3: memref<10x1xf32, #tpu.memory_space<vmem>>, %arg4: memref<10x10xbf16, #tpu.memory_space<vmem>>, %arg5: memref<10x1xf32, #tpu.memory_space<vmem>>, %arg6: memref<20x10xbf16, #tpu.memory_space<vmem>>, %arg7: memref<20x1xf32, #tpu.memory_space<vmem>>, %arg8: memref<2x20xbf16, #tpu.memory_space<vmem>>, %arg9: memref<2x1xf32, #tpu.memory_space<vmem>>, %arg10: memref<2x128xf32, #tpu.memory_space<vmem>>) attributes {dimension_semantics = [#tpu.dimension_semantics<parallel>], iteration_bounds = array<i64: 1>, scalar_prefetch = 0 : i64, scratch_operands = 0 : i64, tpu.core_type = #tpu.core_type<tc>, window_params = [{transform_indices = @transform_0, window_bounds = array<i64: 10, 128>}, {pipeline_mode = #tpu.pipeline_mode<synchronous>, transform_indices = @transform_1, window_bounds = array<i64: 10, 10>}, {pipeline_mode = #tpu.pipeline_mode<synchronous>, transform_indices = @transform_2, window_bounds = array<i64: 10, 1>}, {pipeline_mode = #tpu.pipeline_mode<synchronous>, transform_indices = @transform_3, window_bounds = array<i64: 10, 10>}, {pipeline_mode = #tpu.pipeline_mode<synchronous>, transform_indices = @transform_4, window_bounds = array<i64: 10, 1>}, {pipeline_mode = #tpu.pipeline_mode<synchronous>, transform_indices = @transform_5, window_bounds = array<i64: 20, 10>}, {pipeline_mode = #tpu.pipeline_mode<synchronous>, transform_indices = @transform_6, window_bounds = array<i64: 20, 1>}, {pipeline_mode = #tpu.pipeline_mode<synchronous>, transform_indices = @transform_7, window_bounds = array<i64: 2, 20>}, {pipeline_mode = #tpu.pipeline_mode<synchronous>, transform_indices = @transform_8, window_bounds = array<i64: 2, 1>}, {transform_indices = @transform_9, window_bounds = array<i64: 2, 128>}]} {
    %c0 = arith.constant 0 : index
    %c0_0 = arith.constant 0 : index
    %0 = vector.load %arg1[%c0, %c0_0] : memref<10x128xbf16, #tpu.memory_space<vmem>>, vector<10x128xbf16>
    %c0_1 = arith.constant 0 : index
    %c0_2 = arith.constant 0 : index
    %1 = vector.load %arg2[%c0_1, %c0_2] : memref<10x10xbf16, #tpu.memory_space<vmem>>, vector<10x10xbf16>
    %cst = arith.constant dense<0.000000e+00> : vector<10x128xf32>
    %2 = tpu.matmul %1, %0, %cst {dimension_numbers = #tpu.dot_dimension_numbers<[1], [0], [0], [1], [0, 0, 1, 1], [], []>} : vector<10x10xbf16>, vector<10x128xbf16>, vector<10x128xf32> -> vector<10x128xf32>
    %c0_3 = arith.constant 0 : index
    %c0_4 = arith.constant 0 : index
    %3 = vector.load %arg3[%c0_3, %c0_4] : memref<10x1xf32, #tpu.memory_space<vmem>>, vector<10x1xf32>
    %4 = vector.broadcast %3 : vector<10x1xf32> to vector<10x128xf32>
    %5 = arith.addf %2, %4 : vector<10x128xf32>
    %cst_5 = arith.constant 0.000000e+00 : f32
    %6 = vector.broadcast %cst_5 : f32 to vector<10x128xf32>
    %7 = arith.maximumf %5, %6 : vector<10x128xf32>
    %8 = arith.truncf %7 : vector<10x128xf32> to vector<10x128xbf16>
    %c0_6 = arith.constant 0 : index
    %c0_7 = arith.constant 0 : index
    %9 = vector.load %arg4[%c0_6, %c0_7] : memref<10x10xbf16, #tpu.memory_space<vmem>>, vector<10x10xbf16>
    %cst_8 = arith.constant dense<0.000000e+00> : vector<10x128xf32>
    %10 = tpu.matmul %9, %8, %cst_8 {dimension_numbers = #tpu.dot_dimension_numbers<[1], [0], [0], [1], [0, 0, 1, 1], [], []>} : vector<10x10xbf16>, vector<10x128xbf16>, vector<10x128xf32> -> vector<10x128xf32>
    %c0_9 = arith.constant 0 : index
    %c0_10 = arith.constant 0 : index
    %11 = vector.load %arg5[%c0_9, %c0_10] : memref<10x1xf32, #tpu.memory_space<vmem>>, vector<10x1xf32>
    %12 = vector.broadcast %11 : vector<10x1xf32> to vector<10x128xf32>
    %13 = arith.addf %10, %12 : vector<10x128xf32>
    %cst_11 = arith.constant 0.000000e+00 : f32
    %14 = vector.broadcast %cst_11 : f32 to vector<10x128xf32>
    %15 = arith.maximumf %13, %14 : vector<10x128xf32>
    %16 = arith.truncf %15 : vector<10x128xf32> to vector<10x128xbf16>
    %c0_12 = arith.constant 0 : index
    %c0_13 = arith.constant 0 : index
    %17 = vector.load %arg6[%c0_12, %c0_13] : memref<20x10xbf16, #tpu.memory_space<vmem>>, vector<20x10xbf16>
    %cst_14 = arith.constant dense<0.000000e+00> : vector<20x128xf32>
    %18 = tpu.matmul %17, %16, %cst_14 {dimension_numbers = #tpu.dot_dimension_numbers<[1], [0], [0], [1], [0, 0, 1, 1], [], []>} : vector<20x10xbf16>, vector<10x128xbf16>, vector<20x128xf32> -> vector<20x128xf32>
    %c0_15 = arith.constant 0 : index
    %c0_16 = arith.constant 0 : index
    %19 = vector.load %arg7[%c0_15, %c0_16] : memref<20x1xf32, #tpu.memory_space<vmem>>, vector<20x1xf32>
    %20 = vector.broadcast %19 : vector<20x1xf32> to vector<20x128xf32>
    %21 = arith.addf %18, %20 : vector<20x128xf32>
    %cst_17 = arith.constant 0.000000e+00 : f32
    %22 = vector.broadcast %cst_17 : f32 to vector<20x128xf32>
    %23 = arith.maximumf %21, %22 : vector<20x128xf32>
    %24 = arith.truncf %23 : vector<20x128xf32> to vector<20x128xbf16>
    %c0_18 = arith.constant 0 : index
    %c0_19 = arith.constant 0 : index
    %25 = vector.load %arg8[%c0_18, %c0_19] : memref<2x20xbf16, #tpu.memory_space<vmem>>, vector<2x20xbf16>
    %cst_20 = arith.constant dense<0.000000e+00> : vector<2x128xf32>
    %26 = tpu.matmul %25, %24, %cst_20 {dimension_numbers = #tpu.dot_dimension_numbers<[1], [0], [0], [1], [0, 0, 1, 1], [], []>} : vector<2x20xbf16>, vector<20x128xbf16>, vector<2x128xf32> -> vector<2x128xf32>
    %c0_21 = arith.constant 0 : index
    %c0_22 = arith.constant 0 : index
    %27 = vector.load %arg9[%c0_21, %c0_22] : memref<2x1xf32, #tpu.memory_space<vmem>>, vector<2x1xf32>
    %28 = vector.broadcast %27 : vector<2x1xf32> to vector<2x128xf32>
    %29 = arith.addf %26, %28 : vector<2x128xf32>
    %30 = vector.extract_strided_slice %29 {offsets = [0, 0], sizes = [1, 128], strides = [1, 1]} : vector<2x128xf32> to vector<1x128xf32>
    %31 = vector.extract_strided_slice %29 {offsets = [1, 0], sizes = [1, 128], strides = [1, 1]} : vector<2x128xf32> to vector<1x128xf32>
    %32 = arith.subf %30, %31 : vector<1x128xf32>
    %cst_23 = arith.constant 0.000000e+00 : f32
    %33 = vector.broadcast %cst_23 : f32 to vector<1x128xf32>
    %34 = arith.subf %33, %32 : vector<1x128xf32>
    %35 = math.exp %34 : vector<1x128xf32>
    %cst_24 = arith.constant 1.000000e+00 : f32
    %36 = vector.broadcast %cst_24 : f32 to vector<1x128xf32>
    %37 = arith.addf %36, %35 : vector<1x128xf32>
    %38 = tpu.reciprocal %37 {approx = true} : vector<1x128xf32> -> vector<1x128xf32>
    %c0_25 = arith.constant 0 : index
    %c0_26 = arith.constant 0 : index
    %39 = vector.load %arg10[%c0_25, %c0_26] : memref<2x128xf32, #tpu.memory_space<vmem>>, vector<1x128xf32>
    tpu.vector_store %arg10[%c0_25, %c0_26], %38 {strides = array<i32>} : memref<2x128xf32, #tpu.memory_space<vmem>>, vector<1x128xf32>,
    %cst_27 = arith.constant 1.000000e+00 : f32
    %40 = vector.broadcast %cst_27 : f32 to vector<1x128xf32>
    %41 = arith.subf %40, %38 : vector<1x128xf32>
    %c1 = arith.constant 1 : index
    %c0_28 = arith.constant 0 : index
    %42 = vector.load %arg10[%c1, %c0_28] : memref<2x128xf32, #tpu.memory_space<vmem>>, vector<1x128xf32>
    tpu.vector_store %arg10[%c1, %c0_28], %41 {strides = array<i32>} : memref<2x128xf32, #tpu.memory_space<vmem>>, vector<1x128xf32>,
    return
  }
  func.func @transform_0(%arg0: i32) -> (i32, i32) {
    %c0_i32 = arith.constant 0 : i32
    %c0_i32_0 = arith.constant 0 : i32
    return %c0_i32, %arg0 : i32, i32
  }
  func.func @transform_1(%arg0: i32) -> (i32, i32) {
    %c0_i32 = arith.constant 0 : i32
    %c0_i32_0 = arith.constant 0 : i32
    %c0_i32_1 = arith.constant 0 : i32
    return %c0_i32, %c0_i32_0 : i32, i32
  }
  func.func @transform_2(%arg0: i32) -> (i32, i32) {
    %c0_i32 = arith.constant 0 : i32
    %c0_i32_0 = arith.constant 0 : i32
    %c0_i32_1 = arith.constant 0 : i32
    return %c0_i32, %c0_i32_0 : i32, i32
  }
  func.func @transform_3(%arg0: i32) -> (i32, i32) {
    %c0_i32 = arith.constant 0 : i32
    %c0_i32_0 = arith.constant 0 : i32
    %c0_i32_1 = arith.constant 0 : i32
    return %c0_i32, %c0_i32_0 : i32, i32
  }
  func.func @transform_4(%arg0: i32) -> (i32, i32) {
    %c0_i32 = arith.constant 0 : i32
    %c0_i32_0 = arith.constant 0 : i32
    %c0_i32_1 = arith.constant 0 : i32
    return %c0_i32, %c0_i32_0 : i32, i32
  }
  func.func @transform_5(%arg0: i32) -> (i32, i32) {
    %c0_i32 = arith.constant 0 : i32
    %c0_i32_0 = arith.constant 0 : i32
    %c0_i32_1 = arith.constant 0 : i32
    return %c0_i32, %c0_i32_0 : i32, i32
  }
  func.func @transform_6(%arg0: i32) -> (i32, i32) {
    %c0_i32 = arith.constant 0 : i32
    %c0_i32_0 = arith.constant 0 : i32
    %c0_i32_1 = arith.constant 0 : i32
    return %c0_i32, %c0_i32_0 : i32, i32
  }
  func.func @transform_7(%arg0: i32) -> (i32, i32) {
    %c0_i32 = arith.constant 0 : i32
    %c0_i32_0 = arith.constant 0 : i32
    %c0_i32_1 = arith.constant 0 : i32
    return %c0_i32, %c0_i32_0 : i32, i32
  }
  func.func @transform_8(%arg0: i32) -> (i32, i32) {
    %c0_i32 = arith.constant 0 : i32
    %c0_i32_0 = arith.constant 0 : i32
    %c0_i32_1 = arith.constant 0 : i32
    return %c0_i32, %c0_i32_0 : i32, i32
  }
  func.func @transform_9(%arg0: i32) -> (i32, i32) {
    %c0_i32 = arith.constant 0 : i32
    %c0_i32_0 = arith.constant 0 : i32
    return %c0_i32, %arg0 : i32, i32
  }
}

</mosaic_0001>

<llo_original>
// kernel: tpu_custom_call.1
$region0: #{tpu_custom_call.1}
  #allocation0 [shape = 'u32[]', space=smem, size = 0x4, offset = 0x4, fixed_abs, tag = 'smem constant byte address 0x4 - core index']
  #allocation1 [shape = 'u32[144,128]{1,0:T(1,128)}', space=vmem, size = 0x12000, scoped, tag = 'internal scratch']
  %s0 = inlined_call_operand.vmem [shape: bf16[10,128], index: 0, kind: input, shape index: {}]
  %s1 = inlined_call_operand.vmem [shape: bf16[10,10], index: 1, kind: input, shape index: {}]
  %s2 = inlined_call_operand.vmem [shape: f32[10,1], index: 2, kind: input, shape index: {}]
  %s3 = inlined_call_operand.vmem [shape: bf16[10,10], index: 3, kind: input, shape index: {}]
  %s4 = inlined_call_operand.vmem [shape: f32[10,1], index: 4, kind: input, shape index: {}]
  %s5 = inlined_call_operand.vmem [shape: bf16[20,10], index: 5, kind: input, shape index: {}]
  %s6 = inlined_call_operand.vmem [shape: f32[20,1], index: 6, kind: input, shape index: {}]
  %s7 = inlined_call_operand.vmem [shape: bf16[2,20], index: 7, kind: input, shape index: {}]
  %s8 = inlined_call_operand.vmem [shape: f32[2,1], index: 8, kind: input, shape index: {}]
  %s9 = inlined_call_operand.hbm [shape: f32[2,128], index: 9, kind: output, shape index: {}]
  %s10 = sld [smem:[#allocation0]]
  $region46: #{tpu_custom_call.1} parent=0
    _
  %s12 = ssub.s32 1, %s10
  %s13 = scalar_select 0, %s12, %s10
  $region1: #{tpu_custom_call.1} parent=0
    #allocation2 [shape = 'u8[1024]{0}', space=vmem, size = 0x400, scoped, tag = 'output window, operand 0, single buffered']
    #allocation3 [shape = 's32[1]{0}', space=sflag, size = 0x4, scoped, tag = 'scoped memory for tpu_custom_call.1']
    %14 = vsyncpa [#allocation3], 0
    // Predicated region
    $region2: #{tpu_custom_call.1} parent=1 // pred_check
      _
    $region3: #{tpu_custom_call.1} parent=1 // pred_check_branch
      %16 = sbr.rel (0) target = $region5
    $region4: #{tpu_custom_call.1} parent=1 // pred_region
      _
    $region5: #{tpu_custom_call.1} parent=1 // pred_fallthru
      _
    // Predicated region
    $region6: #{tpu_custom_call.1} parent=1 // pred_check
      _
    $region7: #{tpu_custom_call.1} parent=1 // pred_check_branch
      %18 = sbr.rel (0) target = $region9
    $region8: #{tpu_custom_call.1} parent=1 // pred_region
      _
    $region9: #{tpu_custom_call.1} parent=1 // pred_fallthru
      _
    // Predicated region
    $region10: #{tpu_custom_call.1} parent=1 // pred_check
      _
    $region11: #{tpu_custom_call.1} parent=1 // pred_check_branch
      %20 = sbr.rel (0) target = $region13
    $region12: #{tpu_custom_call.1} parent=1 // pred_region
      _
    $region13: #{tpu_custom_call.1} parent=1 // pred_fallthru
      _
    // Predicated region
    $region14: #{tpu_custom_call.1} parent=1 // pred_check
      _
    $region15: #{tpu_custom_call.1} parent=1 // pred_check_branch
      %22 = sbr.rel (0) target = $region17
    $region16: #{tpu_custom_call.1} parent=1 // pred_region
      _
    $region17: #{tpu_custom_call.1} parent=1 // pred_fallthru
      _
    // Predicated region
    $region18: #{tpu_custom_call.1} parent=1 // pred_check
      _
    $region19: #{tpu_custom_call.1} parent=1 // pred_check_branch
      %24 = sbr.rel (0) target = $region21
    $region20: #{tpu_custom_call.1} parent=1 // pred_region
      _
    $region21: #{tpu_custom_call.1} parent=1 // pred_fallthru
      _
    // Predicated region
    $region22: #{tpu_custom_call.1} parent=1 // pred_check
      _
    $region23: #{tpu_custom_call.1} parent=1 // pred_check_branch
      %26 = sbr.rel (0) target = $region25
    $region24: #{tpu_custom_call.1} parent=1 // pred_region
      _
    $region25: #{tpu_custom_call.1} parent=1 // pred_fallthru
      _
    // Predicated region
    $region26: #{tpu_custom_call.1} parent=1 // pred_check
      _
    $region27: #{tpu_custom_call.1} parent=1 // pred_check_branch
      %28 = sbr.rel (0) target = $region29
    $region28: #{tpu_custom_call.1} parent=1 // pred_region
      _
    $region29: #{tpu_custom_call.1} parent=1 // pred_fallthru
      _
    // Predicated region
    $region30: #{tpu_custom_call.1} parent=1 // pred_check
      _
    $region31: #{tpu_custom_call.1} parent=1 // pred_check_branch
      %30 = sbr.rel (0) target = $region33
    $region32: #{tpu_custom_call.1} parent=1 // pred_region
      _
    $region33: #{tpu_custom_call.1} parent=1 // pred_fallthru
      _
    // Predicated region
    $region34: #{tpu_custom_call.1} parent=1 // pred_check
      _
    $region35: #{tpu_custom_call.1} parent=1 // pred_check_branch
      %32 = sbr.rel (0) target = $region37
    $region36: #{tpu_custom_call.1} parent=1 // pred_region
      _
    $region37: #{tpu_custom_call.1} parent=1 // pred_fallthru
      _
    %v34 = vld [vmem:[%s0] sm:$0xf]
    %v35 = vld [vmem:[%s0 + $0x4] sm:$0x1]
    %v36 = vld [vmem:[%s1] sm:$0xf]
    %v37 = vld [vmem:[%s1 + $0x4] sm:$0x1]
    %v38 = vld [vmem:[%s2] sm:$0xff]
    %v39 = vld [vmem:[%s2 + $0x8] sm:$0x3]
    %41 = vset.pattern.permute.xlu0 0
    %42 = vperm.xlu0 %41, %v38
    %v43 = vpop.permute.xlu0 %42
    %46 = vset.pattern.permute.xlu0 0
    %47 = vperm.xlu0 %46, %v39
    %v48 = vpop.permute.xlu0 %47
    %v52 = vunpack.c.l.b16 %v36
    %v53 = vunpack.c.l.b16 %v37
    %v54 = vpack.c.b16 %v53, %v52
    %v57 = vunpack.c.l.b16 %v34
    %v58 = vunpack.c.l.b16 %v35
    %v59 = vpack.c.b16 %v58, %v57
    %vm60 = vcmask 80896
    %v62 = vsel %vm60, %v54, 0
    %vm64 = vcmask 1044480
    %v66 = vsel %vm64, %v59, 0
    %68 = vmatprep.subr.bf16.mxu0 0
    %69 = vmatpush1.bf16.msra.mxu0 %v66
    %70 = vmatprep.subr.bf16.mxu0 0
    %71 = vmatpush1.bf16.msra.mxu0 0
    %72 = vmatprep.subr.bf16.mxu0 0
    %73 = vmatpush1.bf16.msra.mxu0 0
    %74 = vmatprep.subr.bf16.mxu0 0
    %75 = vmatpush1.bf16.msra.mxu0 0
    %76 = vmatprep.subr.bf16.mxu0 0
    %77 = vmatpush1.bf16.msra.mxu0 0
    %78 = vmatprep.subr.bf16.mxu0 0
    %79 = vmatpush1.bf16.msra.mxu0 0
    %80 = vmatprep.subr.bf16.mxu0 0
    %81 = vmatpush1.bf16.msra.mxu0 0
    %82 = vmatprep.subr.bf16.mxu0 0
    %83 = vmatpush1.bf16.msra.mxu0 0
    %84 = vmatprep.subr.bf16.mxu0 0
    %85 = vmatpush1.bf16.msra.mxu0 0
    %86 = vmatprep.subr.bf16.mxu0 0
    %87 = vmatpush1.bf16.msra.mxu0 0
    %88 = vmatprep.subr.bf16.mxu0 0
    %89 = vmatpush1.bf16.msra.mxu0 0
    %90 = vmatprep.subr.bf16.mxu0 0
    %91 = vmatpush1.bf16.msra.mxu0 0
    %92 = vmatprep.subr.bf16.mxu0 0
    %93 = vmatpush1.bf16.msra.mxu0 0
    %94 = vmatprep.subr.bf16.mxu0 0
    %95 = vmatpush1.bf16.msra.mxu0 0
    %96 = vmatprep.subr.bf16.mxu0 0
    %97 = vmatpush1.bf16.msra.mxu0 0
    %98 = vmatprep.subr.bf16.mxu0 0
    %99 = vmatpush1.bf16.msra.mxu0 0
    %100 = vmatprep.mubr.bf16.mxu0 0
    %101 = vmatmul.mubr.bf16.gmra.mrb[0].mxu0 %v62
    %v102 = vpop.f32.mrb[0].mxu0
    %v103 = vadd.f32 %v43, %v102
    %v104 = vpop.f32.mrb[0].mxu0
    %v105 = vpop.f32.mrb[0].mxu0
    %v106 = vadd.f32 %v48, %v105
    %v107 = vpop.f32.mrb[0].mxu0
    %108 = vdwg.mxu0
    %v109 = vmax.f32 %v103, 0.0
    %v110 = vmax.f32 %v106, 0.0
    %v111 = vpack.c.bf16 %v110, %v109
    %v112 = vld [vmem:[%s3] sm:$0xf]
    %v113 = vld [vmem:[%s3 + $0x4] sm:$0x1]
    %v114 = vld [vmem:[%s4] sm:$0xff]
    %v115 = vld [vmem:[%s4 + $0x8] sm:$0x3]
    %117 = vset.pattern.permute.xlu0 0
    %118 = vperm.xlu0 %117, %v114
    %v119 = vpop.permute.xlu0 %118
    %122 = vset.pattern.permute.xlu0 0
    %123 = vperm.xlu0 %122, %v115
    %v124 = vpop.permute.xlu0 %123
    %v128 = vunpack.c.l.b16 %v112
    %v129 = vunpack.c.l.b16 %v113
    %v130 = vpack.c.b16 %v129, %v128
    %v132 = vsel %vm60, %v130, 0
    %v135 = vsel %vm64, %v111, 0
    %137 = vmatprep.subr.bf16.mxu0 0
    %138 = vmatpush1.bf16.msra.mxu0 %v135
    %139 = vmatprep.subr.bf16.mxu0 0
    %140 = vmatpush1.bf16.msra.mxu0 0
    %141 = vmatprep.subr.bf16.mxu0 0
    %142 = vmatpush1.bf16.msra.mxu0 0
    %143 = vmatprep.subr.bf16.mxu0 0
    %144 = vmatpush1.bf16.msra.mxu0 0
    %145 = vmatprep.subr.bf16.mxu0 0
    %146 = vmatpush1.bf16.msra.mxu0 0
    %147 = vmatprep.subr.bf16.mxu0 0
    %148 = vmatpush1.bf16.msra.mxu0 0
    %149 = vmatprep.subr.bf16.mxu0 0
    %150 = vmatpush1.bf16.msra.mxu0 0
    %151 = vmatprep.subr.bf16.mxu0 0
    %152 = vmatpush1.bf16.msra.mxu0 0
    %153 = vmatprep.subr.bf16.mxu0 0
    %154 = vmatpush1.bf16.msra.mxu0 0
    %155 = vmatprep.subr.bf16.mxu0 0
    %156 = vmatpush1.bf16.msra.mxu0 0
    %157 = vmatprep.subr.bf16.mxu0 0
    %158 = vmatpush1.bf16.msra.mxu0 0
    %159 = vmatprep.subr.bf16.mxu0 0
    %160 = vmatpush1.bf16.msra.mxu0 0
    %161 = vmatprep.subr.bf16.mxu0 0
    %162 = vmatpush1.bf16.msra.mxu0 0
    %163 = vmatprep.subr.bf16.mxu0 0
    %164 = vmatpush1.bf16.msra.mxu0 0
    %165 = vmatprep.subr.bf16.mxu0 0
    %166 = vmatpush1.bf16.msra.mxu0 0
    %167 = vmatprep.subr.bf16.mxu0 0
    %168 = vmatpush1.bf16.msra.mxu0 0
    %169 = vmatprep.mubr.bf16.mxu0 0
    %170 = vmatmul.mubr.bf16.gmra.mrb[0].mxu0 %v132
    %v171 = vpop.f32.mrb[0].mxu0
    %v172 = vadd.f32 %v119, %v171
    %v173 = vpop.f32.mrb[0].mxu0
    %v174 = vpop.f32.mrb[0].mxu0
    %v175 = vadd.f32 %v124, %v174
    %v176 = vpop.f32.mrb[0].mxu0
    %177 = vdwg.mxu0
    %v178 = vmax.f32 %v172, 0.0
    %v179 = vmax.f32 %v175, 0.0
    %v180 = vpack.c.bf16 %v179, %v178
    %v181 = vld [vmem:[%s5] sm:$0xf]
    %v182 = vld [vmem:[%s5 + $0x4] sm:$0xf]
    %v183 = vld [vmem:[%s5 + $0x8] sm:$0x3]
    %v184 = vld [vmem:[%s6] sm:$0xff]
    %v185 = vld [vmem:[%s6 + $0x8] sm:$0xff]
    %v186 = vld [vmem:[%s6 + $0x10] sm:$0xf]
    %188 = vset.pattern.permute.xlu0 0
    %189 = vperm.xlu0 %188, %v184
    %v190 = vpop.permute.xlu0 %189
    %193 = vset.pattern.permute.xlu0 0
    %194 = vperm.xlu0 %193, %v185
    %v195 = vpop.permute.xlu0 %194
    %198 = vset.pattern.permute.xlu0 0
    %199 = vperm.xlu0 %198, %v186
    %v200 = vpop.permute.xlu0 %199
    %v205 = vunpack.c.l.b16 %v181
    %v206 = vunpack.c.l.b16 %v182
    %v207 = vunpack.c.l.b16 %v183
    %v208 = vpack.c.b16 %v206, %v205
    %v209 = vpack.c.b16 %v207, %v207
    %v211 = vsel %vm60, %v208, 0
    %v214 = vsel %vm60, %v209, 0
    %v217 = vsel %vm64, %v180, 0
    %219 = vmatprep.subr.bf16.mxu0 0
    %220 = vmatpush1.bf16.msra.mxu0 %v217
    %221 = vmatprep.subr.bf16.mxu0 0
    %222 = vmatpush1.bf16.msra.mxu0 0
    %223 = vmatprep.subr.bf16.mxu0 0
    %224 = vmatpush1.bf16.msra.mxu0 0
    %225 = vmatprep.subr.bf16.mxu0 0
    %226 = vmatpush1.bf16.msra.mxu0 0
    %227 = vmatprep.subr.bf16.mxu0 0
    %228 = vmatpush1.bf16.msra.mxu0 0
    %229 = vmatprep.subr.bf16.mxu0 0
    %230 = vmatpush1.bf16.msra.mxu0 0
    %231 = vmatprep.subr.bf16.mxu0 0
    %232 = vmatpush1.bf16.msra.mxu0 0
    %233 = vmatprep.subr.bf16.mxu0 0
    %234 = vmatpush1.bf16.msra.mxu0 0
    %235 = vmatprep.subr.bf16.mxu0 0
    %236 = vmatpush1.bf16.msra.mxu0 0
    %237 = vmatprep.subr.bf16.mxu0 0
    %238 = vmatpush1.bf16.msra.mxu0 0
    %239 = vmatprep.subr.bf16.mxu0 0
    %240 = vmatpush1.bf16.msra.mxu0 0
    %241 = vmatprep.subr.bf16.mxu0 0
    %242 = vmatpush1.bf16.msra.mxu0 0
    %243 = vmatprep.subr.bf16.mxu0 0
    %244 = vmatpush1.bf16.msra.mxu0 0
    %245 = vmatprep.subr.bf16.mxu0 0
    %246 = vmatpush1.bf16.msra.mxu0 0
    %247 = vmatprep.subr.bf16.mxu0 0
    %248 = vmatpush1.bf16.msra.mxu0 0
    %249 = vmatprep.subr.bf16.mxu0 0
    %250 = vmatpush1.bf16.msra.mxu0 0
    %251 = vmatprep.mubr.bf16.mxu0 0
    %252 = vmatmul.mubr.bf16.gmra.mrb[0].mxu0 %v211
    %v253 = vpop.f32.mrb[0].mxu0
    %v254 = vadd.f32 %v190, %v253
    %v255 = vpop.f32.mrb[0].mxu0
    %v256 = vpop.f32.mrb[0].mxu0
    %v257 = vadd.f32 %v195, %v256
    %v258 = vpop.f32.mrb[0].mxu0
    %259 = vmatprep.mubr.bf16.mxu0 0
    %260 = vmatmul.mubr.bf16.gmra.mrb[0].mxu0 %v214
    %v261 = vpop.f32.mrb[0].mxu0
    %v262 = vadd.f32 %v200, %v261
    %v263 = vpop.f32.mrb[0].mxu0
    %v264 = vpop.f32.mrb[0].mxu0
    %v265 = vpop.f32.mrb[0].mxu0
    %266 = vdwg.mxu0
    %v267 = vmax.f32 %v254, 0.0
    %v268 = vmax.f32 %v257, 0.0
    %v269 = vmax.f32 %v262, 0.0
    %v270 = vpack.c.bf16 %v268, %v267
    %v271 = vpack.c.bf16 %v269, %v269
    %v272 = vld [vmem:[%s7] sm:$0x1]
    %v273 = vld [vmem:[%s8] sm:$0x3]
    %275 = vset.pattern.permute.xlu0 0
    %276 = vperm.xlu0 %275, %v273
    %v277 = vpop.permute.xlu0 %276
    %vm279 = vcmask 162816
    %v281 = vsel %vm279, %v272, 0
    %vm283 = vcmask 1041408
    %v285 = vsel %vm283, %v271, 0
    %287 = vmatprep.subr.bf16.mxu0 0
    %288 = vmatpush1.bf16.msra.mxu0 %v270
    %289 = vmatprep.subr.bf16.mxu0 0
    %290 = vmatpush1.bf16.msra.mxu0 %v285
    %291 = vmatprep.subr.bf16.mxu0 0
    %292 = vmatpush1.bf16.msra.mxu0 0
    %293 = vmatprep.subr.bf16.mxu0 0
    %294 = vmatpush1.bf16.msra.mxu0 0
    %295 = vmatprep.subr.bf16.mxu0 0
    %296 = vmatpush1.bf16.msra.mxu0 0
    %297 = vmatprep.subr.bf16.mxu0 0
    %298 = vmatpush1.bf16.msra.mxu0 0
    %299 = vmatprep.subr.bf16.mxu0 0
    %300 = vmatpush1.bf16.msra.mxu0 0
    %301 = vmatprep.subr.bf16.mxu0 0
    %302 = vmatpush1.bf16.msra.mxu0 0
    %303 = vmatprep.subr.bf16.mxu0 0
    %304 = vmatpush1.bf16.msra.mxu0 0
    %305 = vmatprep.subr.bf16.mxu0 0
    %306 = vmatpush1.bf16.msra.mxu0 0
    %307 = vmatprep.subr.bf16.mxu0 0
    %308 = vmatpush1.bf16.msra.mxu0 0
    %309 = vmatprep.subr.bf16.mxu0 0
    %310 = vmatpush1.bf16.msra.mxu0 0
    %311 = vmatprep.subr.bf16.mxu0 0
    %312 = vmatpush1.bf16.msra.mxu0 0
    %313 = vmatprep.subr.bf16.mxu0 0
    %314 = vmatpush1.bf16.msra.mxu0 0
    %315 = vmatprep.subr.bf16.mxu0 0
    %316 = vmatpush1.bf16.msra.mxu0 0
    %317 = vmatprep.subr.bf16.mxu0 0
    %318 = vmatpush1.bf16.msra.mxu0 0
    %319 = vmatprep.mubr.bf16.mxu0 0
    %320 = vmatmul.mubr.bf16.gmra.mrb[0].mxu0 %v281
    %v321 = vpop.f32.mrb[0].mxu0
    %v322 = vadd.f32 %v277, %v321
    %v323 = vpop.f32.mrb[0].mxu0
    %v324 = vpop.f32.mrb[0].mxu0
    %v325 = vpop.f32.mrb[0].mxu0
    %326 = vdwg.mxu0
    %v328 = vrot.slane %v322, 1
    %v330 = vsub.f32 %v322, %v328
    %v331 = vsub.f32 0.0, %v330
    %v332 = vmul.f32 %v331, 1.442695
    %v333 = vpow.pop %v332
    %v334 = vadd.f32 %v333, 1.0
    %v335 = vrcp.pop %v334
    %336 = vst [vmem:[#allocation2] sm:$0x1] %v335
    %v337 = vsub.f32 1.0, %v335
    %338 = vst [vmem:[#allocation2 + $0x1] sm:$0x1] %v337
    // Predicated region
    $region38: #{tpu_custom_call.1} parent=1 // pred_check
      _
    $region39: #{tpu_custom_call.1} parent=1 // pred_check_branch
      %340 = sbr.rel (0) target = $region41
    $region40: #{tpu_custom_call.1} parent=1 // pred_region
      %s342 = ssub.s32 32, 32
      %343 = vsyncadd [#allocation3], %s342
      %s345 = sshll.u32 [#allocation2], 4
      %s346 = int_to_ptr.vmem [resolvable:$true] %s345
      %348 = dma.vmem_to_hbm [thread:$0]  %s346, 32, %s9, [#allocation3]
    $region41: #{tpu_custom_call.1} parent=1 // pred_fallthru
      _
    // Predicated region
    $region42: #{tpu_custom_call.1} parent=1 // pred_check
      _
    $region43: #{tpu_custom_call.1} parent=1 // pred_check_branch
      %350 = sbr.rel (0) target = $region45
    $region44: #{tpu_custom_call.1} parent=1 // pred_region
      %351 = dma.done [#allocation3], 32
    $region45: #{tpu_custom_call.1} parent=1 // pred_fallthru
      _
    %352 = vsyncpa [#allocation3], 1

</llo_original>
